<compile_context>
chip_gen: v7x
topology: tpu7x:2x2x1
jax: 0.10.0
libtpu: 0.0.40
codegen_flags: <defaults>
</compile_context>

<pallas_src>
import jax
import jax.numpy as jnp
from jax.experimental import pallas as pl
from jax.experimental.pallas import tpu as pltpu


def correction_kernel(z_ref, h_ref, w1_ref, b1_ref, wh_ref, bh_ref,
                      mu_ref, var_ref):
    """One grid step == one chunk of flattened rows.

    z_ref : (rb, z_dim)          flattened z_{t-1} rows
    h_ref : (rb, rnn_dim)        flattened h_rnn rows
    w1_ref: (z_dim, rnn_dim)     lin1 weight   (VMEM-resident across grid)
    b1_ref: (1, rnn_dim)         lin1 bias
    wh_ref: (rnn_dim, 2*z_dim)   0.5 * [W2 | Wv]  fused, pre-scaled head weight
    bh_ref: (1, 2*z_dim)         [b2 | bv]
    mu_ref : (rb, z_dim)         output mean
    var_ref: (rb, z_dim)         output (tanh-squashed) var
    """
    z_dim = mu_ref.shape[-1]

    # lin1 + tanh
    h_comb_ = jnp.tanh(
        jnp.dot(z_ref[...], w1_ref[...], preferred_element_type=jnp.float32)
        + b1_ref[...]
    )

    # 0.5 * (h_comb_ + h_rnn) @ [W2|Wv] + [b2|bv]
    # (the 0.5 is folded into wh_ref, so only the add remains on the VPU)
    heads = (
        jnp.dot(h_comb_ + h_ref[...], wh_ref[...],
                preferred_element_type=jnp.float32)
        + bh_ref[...]
    )

    mu_ref[...] = heads[:, :z_dim]
    # clamp(-100, 85) dropped: tanh saturates to +-1 in f32 long before that,
    # so results are identical; tanh only on the var half (half the EUP work).
    var_ref[...] = jnp.tanh(heads[:, z_dim:])


def _correction_flat(h_rnn, z_t_1, params, row_block=1024):
    """Core entry: h_rnn (R, rnn_dim), z_t_1 (R, z_dim); R = flattened rows."""
    R, rnn_dim = h_rnn.shape
    z_dim = z_t_1.shape[-1]
    two_z = 2 * z_dim

    # Single full block if everything fits; otherwise chunk rows (multiple of
    # 8 sublanes) and let Pallas mask the final partial block.
    rb = R if R <= row_block else row_block
    grid = (pl.cdiv(R, rb),)

    mu, var = pl.pallas_call(
        correction_kernel,
        out_shape=(
            jax.ShapeDtypeStruct((R, z_dim), jnp.float32),
            jax.ShapeDtypeStruct((R, z_dim), jnp.float32),
        ),
        grid=grid,
        in_specs=[
            # row-chunked activations
            pl.BlockSpec((rb, z_dim), lambda r: (r, 0)),
            pl.BlockSpec((rb, rnn_dim), lambda r: (r, 0)),
            # weights / biases: constant block index -> stay VMEM-resident
            pl.BlockSpec((z_dim, rnn_dim), lambda r: (0, 0)),
            pl.BlockSpec((1, rnn_dim), lambda r: (0, 0)),
            pl.BlockSpec((rnn_dim, two_z), lambda r: (0, 0)),
            pl.BlockSpec((1, two_z), lambda r: (0, 0)),
        ],
        out_specs=(
            pl.BlockSpec((rb, z_dim), lambda r: (r, 0)),
            pl.BlockSpec((rb, z_dim), lambda r: (r, 0)),
        ),
        compiler_params=pltpu.CompilerParams(
            dimension_semantics=("parallel",)),
    )(
        z_t_1, h_rnn,
        params["w1"], params["b1"],
        params["w_heads_scaled"], params["b_heads"],
    )
    return mu, var


def correction_sequence(h_rnn_seq, z_t_1_seq, params, row_block=1024):
    """Batched-over-time entry point (z_{t-1} precomputed for every t).

    h_rnn_seq: (T, b, rnn_dim), z_t_1_seq: (T, b, z_dim)
    Returns mu, var each (T, b, z_dim) -- equivalent to T calls of forward.
    """
    T, b, rnn_dim = h_rnn_seq.shape
    z_dim = z_t_1_seq.shape[-1]
    mu, var = _correction_flat(
        h_rnn_seq.reshape(T * b, rnn_dim),
        z_t_1_seq.reshape(T * b, z_dim),
        params, row_block,
    )
    # contiguous reshapes -> metadata-only, no extra HBM traffic
    return mu.reshape(T, b, z_dim), var.reshape(T, b, z_dim)


def correction_forward(h_rnn, z_t_1, params):
    """Single-timestep wrapper matching Correction.forward(h_rnn, z_t_1)."""
    return _correction_flat(h_rnn, z_t_1, params)


def init_params(key, z_dim, rnn_dim):
    """Init mimicking nn.Linear default (uniform +-1/sqrt(fan_in)).
    Weights stored [in_features, out_features]; head weights fused & pre-scaled."""
    k1, k2, k3, k4, k5, k6 = jax.random.split(key, 6)

    def lin(kw, kb, fan_in, fan_out):
        bound = 1.0 / jnp.sqrt(fan_in)
        w = jax.random.uniform(kw, (fan_in, fan_out), jnp.float32, -bound, bound)
        b = jax.random.uniform(kb, (1, fan_out), jnp.float32, -bound, bound)
        return w, b

    w1, b1 = lin(k1, k2, z_dim, rnn_dim)     # lin1: z_dim -> rnn_dim
    w2, b2 = lin(k3, k4, rnn_dim, z_dim)     # lin2: rnn_dim -> z_dim
    wv, bv = lin(k5, k6, rnn_dim, z_dim)     # lin_v: rnn_dim -> z_dim

    return {
        "w1": w1, "b1": b1,
        # fused head weight with the 0.5 combine scale folded in
        "w_heads_scaled": 0.5 * jnp.concatenate([w2, wv], axis=1),  # (rnn_dim, 2z)
        "b_heads": jnp.concatenate([b2, bv], axis=1),               # (1, 2z)
        # un-fused copies for the pure-JAX reference only
        "w2": w2, "b2": b2, "wv": wv, "bv": bv,
    }


def correction_ref(h_rnn, z_t_1, params):
    """Pure-JAX reference mirroring the PyTorch module (any leading row shape)."""
    h_comb_ = jnp.tanh(z_t_1 @ params["w1"] + params["b1"])
    h_comb = 0.5 * (h_comb_ + h_rnn)
    mu = h_comb @ params["w2"] + params["b2"]
    _var = h_comb @ params["wv"] + params["bv"]
    var = jnp.tanh(jnp.clip(_var, -100.0, 85.0))
    return mu, var


if __name__ == "__main__":
    batch, z_dim, rnn_dim, T = 8, 16, 32, 4

    key = jax.random.PRNGKey(0)
    kp, kh, kz, kh2, kz2 = jax.random.split(key, 5)

    params = init_params(kp, z_dim, rnn_dim)
    h_rnn_seq = jax.random.normal(kh, (T, batch, rnn_dim), jnp.float32)
    z_t_1_seq = jax.random.normal(kz, (T, batch, z_dim), jnp.float32)

    # ---- batched-over-time path: one pallas_call, time folded into rows ----
    seq_fn = jax.jit(lambda h, z, p: correction_sequence(h, z, p))
    mu_seq, var_seq = seq_fn(h_rnn_seq, z_t_1_seq, params)
    jax.block_until_ready((mu_seq, var_seq))

    for t in range(T):
        mu_r, var_r = correction_ref(h_rnn_seq[t], z_t_1_seq[t], params)
        assert jnp.allclose(mu_seq[t], mu_r, atol=1e-5, rtol=1e-5)
        assert jnp.allclose(var_seq[t], var_r, atol=1e-5, rtol=1e-5)

    # ---- single-step drop-in path (matches Correction.forward signature) ----
    step_fn = jax.jit(correction_forward)
    mu1, var1 = step_fn(h_rnn_seq[0], z_t_1_seq[0], params)
    jax.block_until_ready((mu1, var1))
    mu_r, var_r = correction_ref(h_rnn_seq[0], z_t_1_seq[0], params)
    assert jnp.allclose(mu1, mu_r, atol=1e-5, rtol=1e-5)
    assert jnp.allclose(var1, var_r, atol=1e-5, rtol=1e-5)

    # ---- multi-grid-step path (row chunking exercised: 512 rows / 128) ----
    T2 = 64
    h2 = jax.random.normal(kh2, (T2, batch, rnn_dim), jnp.float32)
    z2 = jax.random.normal(kz2, (T2, batch, z_dim), jnp.float32)
    chunk_fn = jax.jit(lambda h, z, p: correction_sequence(h, z, p, row_block=128))
    mu2, var2 = chunk_fn(h2, z2, params)
    jax.block_until_ready((mu2, var2))
    mu2_r, var2_r = correction_ref(
        h2.reshape(T2 * batch, rnn_dim), z2.reshape(T2 * batch, z_dim), params)
    assert jnp.allclose(mu2.reshape(T2 * batch, z_dim), mu2_r, atol=1e-5, rtol=1e-5)
    assert jnp.allclose(var2.reshape(T2 * batch, z_dim), var2_r, atol=1e-5, rtol=1e-5)

    print("KERNEL_OK")
</pallas_src>

<mosaic_0001>
module attributes {stable_mosaic.version = 11 : i64} {
  func.func @correction_kernel(%arg0: i32, %arg1: memref<32x16xf32, #tpu.memory_space<vmem>>, %arg2: memref<32x32xf32, #tpu.memory_space<vmem>>, %arg3: memref<16x32xf32, #tpu.memory_space<vmem>>, %arg4: memref<1x32xf32, #tpu.memory_space<vmem>>, %arg5: memref<32x32xf32, #tpu.memory_space<vmem>>, %arg6: memref<1x32xf32, #tpu.memory_space<vmem>>, %arg7: memref<32x16xf32, #tpu.memory_space<vmem>>, %arg8: memref<32x16xf32, #tpu.memory_space<vmem>>) attributes {dimension_semantics = [#tpu.dimension_semantics<parallel>], iteration_bounds = array<i64: 1>, scalar_prefetch = 0 : i64, scratch_operands = 0 : i64, tpu.core_type = #tpu.core_type<tc>, window_params = [{transform_indices = @transform_0, window_bounds = array<i64: 32, 16>}, {transform_indices = @transform_1, window_bounds = array<i64: 32, 32>}, {pipeline_mode = #tpu.pipeline_mode<synchronous>, transform_indices = @transform_2, window_bounds = array<i64: 16, 32>}, {pipeline_mode = #tpu.pipeline_mode<synchronous>, transform_indices = @transform_3, window_bounds = array<i64: 1, 32>}, {pipeline_mode = #tpu.pipeline_mode<synchronous>, transform_indices = @transform_4, window_bounds = array<i64: 32, 32>}, {pipeline_mode = #tpu.pipeline_mode<synchronous>, transform_indices = @transform_5, window_bounds = array<i64: 1, 32>}, {transform_indices = @transform_6, window_bounds = array<i64: 32, 16>}, {transform_indices = @transform_7, window_bounds = array<i64: 32, 16>}]} {
    %c0 = arith.constant 0 : index
    %c0_0 = arith.constant 0 : index
    %0 = vector.load %arg1[%c0, %c0_0] : memref<32x16xf32, #tpu.memory_space<vmem>>, vector<32x16xf32>
    %c0_1 = arith.constant 0 : index
    %c0_2 = arith.constant 0 : index
    %1 = vector.load %arg3[%c0_1, %c0_2] : memref<16x32xf32, #tpu.memory_space<vmem>>, vector<16x32xf32>
    %cst = arith.constant dense<0.000000e+00> : vector<32x32xf32>
    %2 = tpu.matmul %0, %1, %cst {dimension_numbers = #tpu.dot_dimension_numbers<[1], [0], [0], [1], [0, 0, 1, 1], [], []>} : vector<32x16xf32>, vector<16x32xf32>, vector<32x32xf32> -> vector<32x32xf32>
    %c0_3 = arith.constant 0 : index
    %c0_4 = arith.constant 0 : index
    %3 = vector.load %arg4[%c0_3, %c0_4] : memref<1x32xf32, #tpu.memory_space<vmem>>, vector<1x32xf32>
    %4 = vector.broadcast %3 : vector<1x32xf32> to vector<32x32xf32>
    %5 = arith.addf %2, %4 : vector<32x32xf32>
    %6 = math.tanh %5 : vector<32x32xf32>
    %c0_5 = arith.constant 0 : index
    %c0_6 = arith.constant 0 : index
    %7 = vector.load %arg2[%c0_5, %c0_6] : memref<32x32xf32, #tpu.memory_space<vmem>>, vector<32x32xf32>
    %8 = arith.addf %6, %7 : vector<32x32xf32>
    %c0_7 = arith.constant 0 : index
    %c0_8 = arith.constant 0 : index
    %9 = vector.load %arg5[%c0_7, %c0_8] : memref<32x32xf32, #tpu.memory_space<vmem>>, vector<32x32xf32>
    %cst_9 = arith.constant dense<0.000000e+00> : vector<32x32xf32>
    %10 = tpu.matmul %8, %9, %cst_9 {dimension_numbers = #tpu.dot_dimension_numbers<[1], [0], [0], [1], [0, 0, 1, 1], [], []>} : vector<32x32xf32>, vector<32x32xf32>, vector<32x32xf32> -> vector<32x32xf32>
    %c0_10 = arith.constant 0 : index
    %c0_11 = arith.constant 0 : index
    %11 = vector.load %arg6[%c0_10, %c0_11] : memref<1x32xf32, #tpu.memory_space<vmem>>, vector<1x32xf32>
    %12 = vector.broadcast %11 : vector<1x32xf32> to vector<32x32xf32>
    %13 = arith.addf %10, %12 : vector<32x32xf32>
    %14 = vector.extract_strided_slice %13 {offsets = [0, 0], sizes = [32, 16], strides = [1, 1]} : vector<32x32xf32> to vector<32x16xf32>
    %c0_12 = arith.constant 0 : index
    %c0_13 = arith.constant 0 : index
    %15 = vector.load %arg7[%c0_12, %c0_13] : memref<32x16xf32, #tpu.memory_space<vmem>>, vector<32x16xf32>
    tpu.vector_store %arg7[%c0_12, %c0_13], %14 {strides = array<i32>} : memref<32x16xf32, #tpu.memory_space<vmem>>, vector<32x16xf32>,
    %16 = vector.extract_strided_slice %13 {offsets = [0, 16], sizes = [32, 16], strides = [1, 1]} : vector<32x32xf32> to vector<32x16xf32>
    %17 = math.tanh %16 : vector<32x16xf32>
    %c0_14 = arith.constant 0 : index
    %c0_15 = arith.constant 0 : index
    %18 = vector.load %arg8[%c0_14, %c0_15] : memref<32x16xf32, #tpu.memory_space<vmem>>, vector<32x16xf32>
    tpu.vector_store %arg8[%c0_14, %c0_15], %17 {strides = array<i32>} : memref<32x16xf32, #tpu.memory_space<vmem>>, vector<32x16xf32>,
    return
  }
  func.func @transform_0(%arg0: i32) -> (i32, i32) {
    %c0_i32 = arith.constant 0 : i32
    %c0_i32_0 = arith.constant 0 : i32
    return %arg0, %c0_i32 : i32, i32
  }
  func.func @transform_1(%arg0: i32) -> (i32, i32) {
    %c0_i32 = arith.constant 0 : i32
    %c0_i32_0 = arith.constant 0 : i32
    return %arg0, %c0_i32 : i32, i32
  }
  func.func @transform_2(%arg0: i32) -> (i32, i32) {
    %c0_i32 = arith.constant 0 : i32
    %c0_i32_0 = arith.constant 0 : i32
    %c0_i32_1 = arith.constant 0 : i32
    return %c0_i32, %c0_i32_0 : i32, i32
  }
  func.func @transform_3(%arg0: i32) -> (i32, i32) {
    %c0_i32 = arith.constant 0 : i32
    %c0_i32_0 = arith.constant 0 : i32
    %c0_i32_1 = arith.constant 0 : i32
    return %c0_i32, %c0_i32_0 : i32, i32
  }
  func.func @transform_4(%arg0: i32) -> (i32, i32) {
    %c0_i32 = arith.constant 0 : i32
    %c0_i32_0 = arith.constant 0 : i32
    %c0_i32_1 = arith.constant 0 : i32
    return %c0_i32, %c0_i32_0 : i32, i32
  }
  func.func @transform_5(%arg0: i32) -> (i32, i32) {
    %c0_i32 = arith.constant 0 : i32
    %c0_i32_0 = arith.constant 0 : i32
    %c0_i32_1 = arith.constant 0 : i32
    return %c0_i32, %c0_i32_0 : i32, i32
  }
  func.func @transform_6(%arg0: i32) -> (i32, i32) {
    %c0_i32 = arith.constant 0 : i32
    %c0_i32_0 = arith.constant 0 : i32
    return %arg0, %c0_i32 : i32, i32
  }
  func.func @transform_7(%arg0: i32) -> (i32, i32) {
    %c0_i32 = arith.constant 0 : i32
    %c0_i32_0 = arith.constant 0 : i32
    return %arg0, %c0_i32 : i32, i32
  }
}

</mosaic_0001>

<llo_original>
// kernel: _lambda_.1
$region0: #{_lambda_.1}
  #allocation0 [shape = 'u32[]', space=smem, size = 0x4, offset = 0x4, fixed_abs, tag = 'smem constant byte address 0x4 - core index']
  #allocation1 [shape = 'u32[144,128]{1,0:T(1,128)}', space=vmem, size = 0x12000, scoped, tag = 'internal scratch']
  %s0 = inlined_call_operand.hbm [shape: f32[32,16], index: 0, kind: input, shape index: {}]
  %s1 = inlined_call_operand.hbm [shape: f32[32,32], index: 1, kind: input, shape index: {}]
  %s2 = inlined_call_operand.vmem [shape: f32[16,32], index: 2, kind: input, shape index: {}]
  %s3 = inlined_call_operand.vmem [shape: f32[1,32], index: 3, kind: input, shape index: {}]
  %s4 = inlined_call_operand.hbm [shape: f32[32,32], index: 4, kind: input, shape index: {}]
  %s5 = inlined_call_operand.vmem [shape: f32[1,32], index: 5, kind: input, shape index: {}]
  %s6 = inlined_call_operand.hbm [shape: f32[32,16], index: 6, kind: output, shape index: {0}]
  %s7 = inlined_call_operand.hbm [shape: f32[32,16], index: 7, kind: output, shape index: {1}]
  %8 = xla_tuple %s6, %s7
  %s9 = sld [smem:[#allocation0]]
  $region54: #{_lambda_.1} parent=0
    _
  %s11 = ssub.s32 1, %s9
  %s12 = scalar_select 0, %s11, %s9
  $region1: #{_lambda_.1} parent=0
    #allocation2 [shape = 'u8[16384]{0}', space=vmem, size = 0x4000, scoped, tag = 'input window, operand 0, single buffered']
    #allocation3 [shape = 's32[1]{0}', space=sflag, size = 0x4, scoped, tag = 'scoped memory for _lambda_.1']
    #allocation4 [shape = 's32[1]{0}', space=sflag, size = 0x4, scoped, tag = 'scoped memory for _lambda_.1']
    #allocation5 [shape = 'u8[16384]{0}', space=vmem, size = 0x4000, scoped, tag = 'input window, operand 1, single buffered']
    #allocation6 [shape = 's32[1]{0}', space=sflag, size = 0x4, scoped, tag = 'scoped memory for _lambda_.1']
    #allocation7 [shape = 'u8[16384]{0}', space=vmem, size = 0x4000, scoped, tag = 'input window, operand 4, single buffered']
    #allocation8 [shape = 'u8[16384]{0}', space=vmem, size = 0x4000, scoped, tag = 'output window, operand 0, single buffered']
    #allocation9 [shape = 'u8[16384]{0}', space=vmem, size = 0x4000, scoped, tag = 'output window, operand 1, single buffered']
    #allocation10 [shape = 's32[1]{0}', space=sflag, size = 0x4, scoped, tag = 'scoped memory for _lambda_.1']
    %13 = vsyncpa [#allocation3], 0
    %14 = vsyncpa [#allocation6], 0
    %15 = vsyncpa [#allocation4], 0
    %16 = vsyncpa [#allocation10], 0
    // Predicated region
    $region2: #{_lambda_.1} parent=1 // pred_check
      _
    $region3: #{_lambda_.1} parent=1 // pred_check_branch
      %18 = sbr.rel (0) target = $region5
    $region4: #{_lambda_.1} parent=1 // pred_region
      %s20 = ssub.s32 512, 512
      %21 = vsyncadd [#allocation3], %s20
      %s22 = sshll.u32 [#allocation2], 4
      %s23 = int_to_ptr.vmem [resolvable:$true] %s22
      %28 = dma.hbm_to_vmem [thread:$0]  %s0, 512, %s23, [#allocation3], 128, 128, 8
    $region5: #{_lambda_.1} parent=1 // pred_fallthru
      _
    // Predicated region
    $region6: #{_lambda_.1} parent=1 // pred_check
      _
    $region7: #{_lambda_.1} parent=1 // pred_check_branch
      %30 = sbr.rel (0) target = $region9
    $region8: #{_lambda_.1} parent=1 // pred_region
      %s32 = ssub.s32 512, 512
      %33 = vsyncadd [#allocation6], %s32
      %s34 = sshll.u32 [#allocation5], 4
      %s35 = int_to_ptr.vmem [resolvable:$true] %s34
      %40 = dma.hbm_to_vmem [thread:$0]  %s1, 512, %s35, [#allocation6], 128, 128, 8
    $region9: #{_lambda_.1} parent=1 // pred_fallthru
      _
    // Predicated region
    $region10: #{_lambda_.1} parent=1 // pred_check
      _
    $region11: #{_lambda_.1} parent=1 // pred_check_branch
      %42 = sbr.rel (0) target = $region13
    $region12: #{_lambda_.1} parent=1 // pred_region
      _
    $region13: #{_lambda_.1} parent=1 // pred_fallthru
      _
    // Predicated region
    $region14: #{_lambda_.1} parent=1 // pred_check
      _
    $region15: #{_lambda_.1} parent=1 // pred_check_branch
      %44 = sbr.rel (0) target = $region17
    $region16: #{_lambda_.1} parent=1 // pred_region
      _
    $region17: #{_lambda_.1} parent=1 // pred_fallthru
      _
    // Predicated region
    $region18: #{_lambda_.1} parent=1 // pred_check
      _
    $region19: #{_lambda_.1} parent=1 // pred_check_branch
      %46 = sbr.rel (0) target = $region21
    $region20: #{_lambda_.1} parent=1 // pred_region
      %s48 = ssub.s32 512, 512
      %49 = vsyncadd [#allocation6], %s48
      %s50 = sshll.u32 [#allocation7], 4
      %s51 = int_to_ptr.vmem [resolvable:$true] %s50
      %56 = dma.hbm_to_vmem [thread:$0]  %s4, 512, %s51, [#allocation6], 128, 128, 8
    $region21: #{_lambda_.1} parent=1 // pred_fallthru
      _
    // Predicated region
    $region22: #{_lambda_.1} parent=1 // pred_check
      _
    $region23: #{_lambda_.1} parent=1 // pred_check_branch
      %58 = sbr.rel (0) target = $region25
    $region24: #{_lambda_.1} parent=1 // pred_region
      _
    $region25: #{_lambda_.1} parent=1 // pred_fallthru
      _
    // Predicated region
    $region26: #{_lambda_.1} parent=1 // pred_check
      _
    $region27: #{_lambda_.1} parent=1 // pred_check_branch
      %60 = sbr.rel (0) target = $region29
    $region28: #{_lambda_.1} parent=1 // pred_region
      %61 = dma.done [#allocation3], 512
    $region29: #{_lambda_.1} parent=1 // pred_fallthru
      _
    // Predicated region
    $region30: #{_lambda_.1} parent=1 // pred_check
      _
    $region31: #{_lambda_.1} parent=1 // pred_check_branch
      %63 = sbr.rel (0) target = $region33
    $region32: #{_lambda_.1} parent=1 // pred_region
      %64 = dma.done [#allocation6], 512
    $region33: #{_lambda_.1} parent=1 // pred_fallthru
      _
    // Predicated region
    $region34: #{_lambda_.1} parent=1 // pred_check
      _
    $region35: #{_lambda_.1} parent=1 // pred_check_branch
      %66 = sbr.rel (0) target = $region37
    $region36: #{_lambda_.1} parent=1 // pred_region
      %67 = dma.done [#allocation6], 512
    $region37: #{_lambda_.1} parent=1 // pred_fallthru
      _
    %v68 = vld [vmem:[#allocation2] sm:$0xff]
    %v69 = vld [vmem:[#allocation2 + $0x8] sm:$0xff]
    %v70 = vld [vmem:[#allocation2 + $0x10] sm:$0xff]
    %v71 = vld [vmem:[#allocation2 + $0x18] sm:$0xff]
    %v72 = vld [vmem:[%s2] sm:$0xff]
    %v73 = vld [vmem:[%s2 + $0x8] sm:$0xff]
    %v74 = vld [vmem:[%s3] sm:$0x1]
    %v76 = vlaneseq
    %v77 = vshrl.u32 %v76, 7
    %v78 = vsub.s32 0, %v77
    %v79 = vrot.slane %v74, %v78
    %vm81 = vcmask 130048
    %v83 = vsel %vm81, %v68, 0
    %v86 = vsel %vm81, %v69, 0
    %v89 = vsel %vm81, %v70, 0
    %v92 = vsel %vm81, %v71, 0
    %94 = vmatprep.subr.mxu0 0.0
    %95 = vmatpush1.msra.mxu0 %v72
    %96 = vmatprep.subr.mxu0 0.0
    %97 = vmatpush1.msra.mxu0 %v73
    %98 = vmatprep.subr.mxu0 0.0
    %99 = vmatpush1.msra.mxu0 0.0
    %100 = vmatprep.subr.mxu0 0.0
    %101 = vmatpush1.msra.mxu0 0.0
    %102 = vmatprep.subr.mxu0 0.0
    %103 = vmatpush1.msra.mxu0 0.0
    %104 = vmatprep.subr.mxu0 0.0
    %105 = vmatpush1.msra.mxu0 0.0
    %106 = vmatprep.subr.mxu0 0.0
    %107 = vmatpush1.msra.mxu0 0.0
    %108 = vmatprep.subr.mxu0 0.0
    %109 = vmatpush1.msra.mxu0 0.0
    %110 = vmatprep.subr.mxu0 0.0
    %111 = vmatpush1.msra.mxu0 0.0
    %112 = vmatprep.subr.mxu0 0.0
    %113 = vmatpush1.msra.mxu0 0.0
    %114 = vmatprep.subr.mxu0 0.0
    %115 = vmatpush1.msra.mxu0 0.0
    %116 = vmatprep.subr.mxu0 0.0
    %117 = vmatpush1.msra.mxu0 0.0
    %118 = vmatprep.subr.mxu0 0.0
    %119 = vmatpush1.msra.mxu0 0.0
    %120 = vmatprep.subr.mxu0 0.0
    %121 = vmatpush1.msra.mxu0 0.0
    %122 = vmatprep.subr.mxu0 0.0
    %123 = vmatpush1.msra.mxu0 0.0
    %124 = vmatprep.subr.mxu0 0.0
    %125 = vmatpush1.msra.mxu0 0.0
    %126 = vmatprep.subr.mxu0 0.0
    %127 = vmatpush1.msra.mxu0 0.0
    %128 = vmatprep.subr.mxu0 0.0
    %129 = vmatpush1.msra.mxu0 0.0
    %130 = vmatprep.subr.mxu0 0.0
    %131 = vmatpush1.msra.mxu0 0.0
    %132 = vmatprep.subr.mxu0 0.0
    %133 = vmatpush1.msra.mxu0 0.0
    %134 = vmatprep.subr.mxu0 0.0
    %135 = vmatpush1.msra.mxu0 0.0
    %136 = vmatprep.subr.mxu0 0.0
    %137 = vmatpush1.msra.mxu0 0.0
    %138 = vmatprep.subr.mxu0 0.0
    %139 = vmatpush1.msra.mxu0 0.0
    %140 = vmatprep.subr.mxu0 0.0
    %141 = vmatpush1.msra.mxu0 0.0
    %142 = vmatprep.subr.mxu0 0.0
    %143 = vmatpush1.msra.mxu0 0.0
    %144 = vmatprep.subr.mxu0 0.0
    %145 = vmatpush1.msra.mxu0 0.0
    %146 = vmatprep.subr.mxu0 0.0
    %147 = vmatpush1.msra.mxu0 0.0
    %148 = vmatprep.subr.mxu0 0.0
    %149 = vmatpush1.msra.mxu0 0.0
    %150 = vmatprep.subr.mxu0 0.0
    %151 = vmatpush1.msra.mxu0 0.0
    %152 = vmatprep.subr.mxu0 0.0
    %153 = vmatpush1.msra.mxu0 0.0
    %154 = vmatprep.subr.mxu0 0.0
    %155 = vmatpush1.msra.mxu0 0.0
    %156 = vmatprep.subr.mxu0 0.0
    %157 = vmatpush1.msra.mxu0 0.0
    %158 = vmatprep.mubr.f32.mxu0 0.0
    %159 = vmatmul.mubr.f32.gmra.mrb[0].mxu0 %v83
    %v160 = vpop.f32.mrb[0].mxu0
    %v161 = vadd.f32 %v79, %v160
    %v162 = vpop.f32.mrb[0].mxu0
    %163 = vmatprep.mubr.f32.mxu0 0.0
    %164 = vmatmul.mubr.f32.gmra.mrb[0].mxu0 %v86
    %v165 = vpop.f32.mrb[0].mxu0
    %v166 = vadd.f32 %v79, %v165
    %v167 = vpop.f32.mrb[0].mxu0
    %168 = vmatprep.mubr.f32.mxu0 0.0
    %169 = vmatmul.mubr.f32.gmra.mrb[0].mxu0 %v89
    %v170 = vpop.f32.mrb[0].mxu0
    %v171 = vadd.f32 %v79, %v170
    %v172 = vpop.f32.mrb[0].mxu0
    %173 = vmatprep.mubr.f32.mxu0 0.0
    %174 = vmatmul.mubr.f32.gmra.mrb[0].mxu0 %v92
    %v175 = vpop.f32.mrb[0].mxu0
    %v176 = vadd.f32 %v79, %v175
    %v177 = vpop.f32.mrb[0].mxu0
    %178 = vdwg.mxu0
    %v179 = vtanh.pop %v161
    %v180 = vtanh.pop %v166
    %v181 = vtanh.pop %v171
    %v182 = vtanh.pop %v176
    %v183 = vld [vmem:[#allocation5] sm:$0xff]
    %v184 = vld [vmem:[#allocation5 + $0x8] sm:$0xff]
    %v185 = vld [vmem:[#allocation5 + $0x10] sm:$0xff]
    %v186 = vld [vmem:[#allocation5 + $0x18] sm:$0xff]
    %v187 = vadd.f32 %v179, %v183
    %v188 = vadd.f32 %v180, %v184
    %v189 = vadd.f32 %v181, %v185
    %v190 = vadd.f32 %v182, %v186
    %v191 = vld [vmem:[#allocation7] sm:$0xff]
    %v192 = vld [vmem:[#allocation7 + $0x8] sm:$0xff]
    %v193 = vld [vmem:[#allocation7 + $0x10] sm:$0xff]
    %v194 = vld [vmem:[#allocation7 + $0x18] sm:$0xff]
    %v195 = vld [vmem:[%s5] sm:$0x1]
    %v197 = vlaneseq
    %v198 = vshrl.u32 %v197, 7
    %v199 = vsub.s32 0, %v198
    %v200 = vrot.slane %v195, %v199
    %vm202 = vcmask 261120
    %v204 = vsel %vm202, %v187, 0
    %v207 = vsel %vm202, %v188, 0
    %v210 = vsel %vm202, %v189, 0
    %v213 = vsel %vm202, %v190, 0
    %215 = vmatprep.subr.mxu0 0.0
    %216 = vmatpush1.msra.mxu0 %v191
    %217 = vmatprep.subr.mxu0 0.0
    %218 = vmatpush1.msra.mxu0 %v192
    %219 = vmatprep.subr.mxu0 0.0
    %220 = vmatpush1.msra.mxu0 %v193
    %221 = vmatprep.subr.mxu0 0.0
    %222 = vmatpush1.msra.mxu0 %v194
    %223 = vmatprep.subr.mxu0 0.0
    %224 = vmatpush1.msra.mxu0 0.0
    %225 = vmatprep.subr.mxu0 0.0
    %226 = vmatpush1.msra.mxu0 0.0
    %227 = vmatprep.subr.mxu0 0.0
    %228 = vmatpush1.msra.mxu0 0.0
    %229 = vmatprep.subr.mxu0 0.0
    %230 = vmatpush1.msra.mxu0 0.0
    %231 = vmatprep.subr.mxu0 0.0
    %232 = vmatpush1.msra.mxu0 0.0
    %233 = vmatprep.subr.mxu0 0.0
    %234 = vmatpush1.msra.mxu0 0.0
    %235 = vmatprep.subr.mxu0 0.0
    %236 = vmatpush1.msra.mxu0 0.0
    %237 = vmatprep.subr.mxu0 0.0
    %238 = vmatpush1.msra.mxu0 0.0
    %239 = vmatprep.subr.mxu0 0.0
    %240 = vmatpush1.msra.mxu0 0.0
    %241 = vmatprep.subr.mxu0 0.0
    %242 = vmatpush1.msra.mxu0 0.0
    %243 = vmatprep.subr.mxu0 0.0
    %244 = vmatpush1.msra.mxu0 0.0
    %245 = vmatprep.subr.mxu0 0.0
    %246 = vmatpush1.msra.mxu0 0.0
    %247 = vmatprep.subr.mxu0 0.0
    %248 = vmatpush1.msra.mxu0 0.0
    %249 = vmatprep.subr.mxu0 0.0
    %250 = vmatpush1.msra.mxu0 0.0
    %251 = vmatprep.subr.mxu0 0.0
    %252 = vmatpush1.msra.mxu0 0.0
    %253 = vmatprep.subr.mxu0 0.0
    %254 = vmatpush1.msra.mxu0 0.0
    %255 = vmatprep.subr.mxu0 0.0
    %256 = vmatpush1.msra.mxu0 0.0
    %257 = vmatprep.subr.mxu0 0.0
    %258 = vmatpush1.msra.mxu0 0.0
    %259 = vmatprep.subr.mxu0 0.0
    %260 = vmatpush1.msra.mxu0 0.0
    %261 = vmatprep.subr.mxu0 0.0
    %262 = vmatpush1.msra.mxu0 0.0
    %263 = vmatprep.subr.mxu0 0.0
    %264 = vmatpush1.msra.mxu0 0.0
    %265 = vmatprep.subr.mxu0 0.0
    %266 = vmatpush1.msra.mxu0 0.0
    %267 = vmatprep.subr.mxu0 0.0
    %268 = vmatpush1.msra.mxu0 0.0
    %269 = vmatprep.subr.mxu0 0.0
    %270 = vmatpush1.msra.mxu0 0.0
    %271 = vmatprep.subr.mxu0 0.0
    %272 = vmatpush1.msra.mxu0 0.0
    %273 = vmatprep.subr.mxu0 0.0
    %274 = vmatpush1.msra.mxu0 0.0
    %275 = vmatprep.subr.mxu0 0.0
    %276 = vmatpush1.msra.mxu0 0.0
    %277 = vmatprep.subr.mxu0 0.0
    %278 = vmatpush1.msra.mxu0 0.0
    %279 = vmatprep.mubr.f32.mxu0 0.0
    %280 = vmatmul.mubr.f32.gmra.mrb[0].mxu0 %v204
    %v281 = vpop.f32.mrb[0].mxu0
    %v282 = vadd.f32 %v200, %v281
    %v283 = vpop.f32.mrb[0].mxu0
    %284 = vmatprep.mubr.f32.mxu0 0.0
    %285 = vmatmul.mubr.f32.gmra.mrb[0].mxu0 %v207
    %v286 = vpop.f32.mrb[0].mxu0
    %v287 = vadd.f32 %v200, %v286
    %v288 = vpop.f32.mrb[0].mxu0
    %289 = vmatprep.mubr.f32.mxu0 0.0
    %290 = vmatmul.mubr.f32.gmra.mrb[0].mxu0 %v210
    %v291 = vpop.f32.mrb[0].mxu0
    %v292 = vadd.f32 %v200, %v291
    %v293 = vpop.f32.mrb[0].mxu0
    %294 = vmatprep.mubr.f32.mxu0 0.0
    %295 = vmatmul.mubr.f32.gmra.mrb[0].mxu0 %v213
    %v296 = vpop.f32.mrb[0].mxu0
    %v297 = vadd.f32 %v200, %v296
    %v298 = vpop.f32.mrb[0].mxu0
    %299 = vdwg.mxu0
    %300 = vst.msk [vmem:[#allocation8] sm:$0xff] %vm81, %v282
    %301 = vst.msk [vmem:[#allocation8 + $0x8] sm:$0xff] %vm81, %v287
    %302 = vst.msk [vmem:[#allocation8 + $0x10] sm:$0xff] %vm81, %v292
    %303 = vst.msk [vmem:[#allocation8 + $0x18] sm:$0xff] %vm81, %v297
    %v304 = vtanh.pop %v282
    %v305 = vtanh.pop %v287
    %v306 = vtanh.pop %v292
    %v307 = vtanh.pop %v297
    %312 = vrot.lane.b32.xlu0 %v304, 112
    %v313 = vpop.permute.xlu0 %312
    %314 = vrot.lane.b32.xlu0 %v305, 112
    %v315 = vpop.permute.xlu0 %314
    %316 = vrot.lane.b32.xlu0 %v306, 112
    %v317 = vpop.permute.xlu0 %316
    %318 = vrot.lane.b32.xlu0 %v307, 112
    %v319 = vpop.permute.xlu0 %318
    %324 = vst.msk [vmem:[#allocation9] sm:$0xff] %vm81, %v313
    %325 = vst.msk [vmem:[#allocation9 + $0x8] sm:$0xff] %vm81, %v315
    %326 = vst.msk [vmem:[#allocation9 + $0x10] sm:$0xff] %vm81, %v317
    %327 = vst.msk [vmem:[#allocation9 + $0x18] sm:$0xff] %vm81, %v319
    // Predicated region
    $region38: #{_lambda_.1} parent=1 // pred_check
      _
    $region39: #{_lambda_.1} parent=1 // pred_check_branch
      %329 = sbr.rel (0) target = $region41
    $region40: #{_lambda_.1} parent=1 // pred_region
      %s331 = ssub.s32 512, 512
      %332 = vsyncadd [#allocation4], %s331
      %s333 = sshll.u32 [#allocation8], 4
      %s334 = int_to_ptr.vmem [resolvable:$true] %s333
      %339 = dma.vmem_to_hbm [thread:$0]  %s334, 512, %s6, [#allocation4], 128, 128, 8
    $region41: #{_lambda_.1} parent=1 // pred_fallthru
      _
    // Predicated region
    $region42: #{_lambda_.1} parent=1 // pred_check
      _
    $region43: #{_lambda_.1} parent=1 // pred_check_branch
      %341 = sbr.rel (0) target = $region45
    $region44: #{_lambda_.1} parent=1 // pred_region
      %s343 = ssub.s32 512, 512
      %344 = vsyncadd [#allocation10], %s343
      %s345 = sshll.u32 [#allocation9], 4
      %s346 = int_to_ptr.vmem [resolvable:$true] %s345
      %351 = dma.vmem_to_hbm [thread:$0]  %s346, 512, %s7, [#allocation10], 128, 128, 8
    $region45: #{_lambda_.1} parent=1 // pred_fallthru
      _
    // Predicated region
    $region46: #{_lambda_.1} parent=1 // pred_check
      _
    $region47: #{_lambda_.1} parent=1 // pred_check_branch
      %353 = sbr.rel (0) target = $region49
    $region48: #{_lambda_.1} parent=1 // pred_region
      %354 = dma.done [#allocation4], 512
    $region49: #{_lambda_.1} parent=1 // pred_fallthru
      _
    // Predicated region
    $region50: #{_lambda_.1} parent=1 // pred_check
      _
    $region51: #{_lambda_.1} parent=1 // pred_check_branch
      %356 = sbr.rel (0) target = $region53
    $region52: #{_lambda_.1} parent=1 // pred_region
      %357 = dma.done [#allocation10], 512
    $region53: #{_lambda_.1} parent=1 // pred_fallthru
      _
    %358 = vsyncpa [#allocation3], 1
    %359 = vsyncpa [#allocation6], 1
    %360 = vsyncpa [#allocation4], 1
    %361 = vsyncpa [#allocation10], 1

</llo_original>
